<compile_context>
chip_gen: v6e
topology: v6e:2x2x1
jax: 0.10.0
libtpu: 0.0.40
codegen_flags: <defaults>
</compile_context>

<pallas_src>
import jax
import jax.numpy as jnp
from jax.experimental import pallas as pl
from jax.experimental.pallas import tpu as pltpu


def dueling_dqn_kernel(xt_ref, w1_ref, b1_ref, wqt_ref, bq_ref, out_ref):
    # xt: (state_dim, tile_b), w1: (hidden, state_dim)  [PyTorch layout]
    # Hidden layer, batch on lanes: (hidden, tile_b). f32 accumulation, f32 epilogue.
    y1t = jnp.dot(w1_ref[...], xt_ref[...], preferred_element_type=jnp.float32)
    y1t = jnp.maximum(y1t + b1_ref[...], 0.0)
    # Folded dueling head: (A, hidden) @ (hidden, tile_b) -> (A, tile_b), lane-dense.
    qt = jnp.dot(wqt_ref[...], y1t, preferred_element_type=jnp.float32) + bq_ref[...]
    out_ref[...] = qt.astype(out_ref.dtype)


def prepare_params(w1, b1, wv, bv, wa, ba):
    """One-time parameter prep (hoisted out of the hot path), f32 end to end.

    PyTorch layouts in: w1 (hidden, state_dim), wv (1, hidden), wa (A, hidden),
    biases (out,). Folds both heads + the dueling combine into a single
    (A, hidden) weight and (A, 1) bias:
        Q^T = (wv + wa - mean_a(wa)) @ y1^T + (bv + ba - mean(ba))
    """
    w1 = jnp.asarray(w1, jnp.float32)                       # (hidden, state_dim)
    b1 = jnp.asarray(b1, jnp.float32)                       # (hidden,)
    wv = jnp.asarray(wv, jnp.float32)                       # (1, hidden)
    wa = jnp.asarray(wa, jnp.float32)                       # (A, hidden)
    bv = jnp.asarray(bv, jnp.float32)                       # (1,)
    ba = jnp.asarray(ba, jnp.float32)                       # (A,)

    wqt = wv + wa - jnp.mean(wa, axis=0, keepdims=True)     # (A, hidden)
    bq = bv + ba - jnp.mean(ba)                              # (A,)

    return (
        w1,                    # (hidden, state_dim)  f32
        b1[:, None],           # (hidden, 1)          f32
        wqt,                   # (A, hidden)          f32
        bq[:, None],           # (A, 1)               f32
    )


def _choose_tile_b(batch):
    # Whole batch in one grid step unless B is very large: at these head sizes the
    # kernel is launch/overhead-bound, not VMEM-bound (even 64K f32 rows of x ~ 1 MiB).
    if batch <= 4096:
        return batch
    # Large batches: tile the lane axis; prefer multiples of 512 (fills v6e/v7x
    # 256-wide MXU result path and v5e's 128-lane layout with unmasked stores).
    for t in (1024, 512, 256, 128):
        if batch % t == 0:
            return t
    return batch  # non-aligned large batch: still one step (correct, just big)


def dueling_dqn_forward(x, params, *, tile_b=None):
    """x: (B, state_dim). params: output of prepare_params(). Returns (B, A) f32."""
    w1, b1_c, wqt, bq_c = params
    B, state_dim = x.shape
    hidden = w1.shape[0]
    act_dim = wqt.shape[0]

    if tile_b is None:
        tile_b = _choose_tile_b(B)
    grid_n = pl.cdiv(B, tile_b)

    # Batch on the lane axis: (state_dim, B). Wrapper-side transpose is layout
    # plumbing; it buys lane-dense loads/compute/stores inside the kernel.
    x_t = jnp.asarray(x, jnp.float32).T

    # Only shard across TensorCores (v7x) when per-core work is non-trivial.
    dim_sem = ("parallel",) if grid_n > 1 else ("arbitrary",)

    q_t = pl.pallas_call(
        dueling_dqn_kernel,
        out_shape=jax.ShapeDtypeStruct((act_dim, B), jnp.float32),
        grid_spec=pltpu.PrefetchScalarGridSpec(
            num_scalar_prefetch=0,
            grid=(grid_n,),
            in_specs=[
                pl.BlockSpec((state_dim, tile_b), lambda i: (0, i)),  # xT batch tile
                pl.BlockSpec((hidden, state_dim), lambda i: (0, 0)),  # resident w1
                pl.BlockSpec((hidden, 1), lambda i: (0, 0)),          # resident b1
                pl.BlockSpec((act_dim, hidden), lambda i: (0, 0)),    # resident wqT
                pl.BlockSpec((act_dim, 1), lambda i: (0, 0)),         # resident bq
            ],
            out_specs=pl.BlockSpec((act_dim, tile_b), lambda i: (0, i)),
        ),
        compiler_params=pltpu.CompilerParams(dimension_semantics=dim_sem),
    )(x_t, w1, b1_c, wqt, bq_c)

    # Back to module semantics: (B, A).
    return q_t.T


def dueling_dqn_reference(x, w1, b1, wv, bv, wa, ba):
    y1 = jnp.maximum(x @ w1.T + b1, 0.0)
    value = y1 @ wv.T + bv
    adv = y1 @ wa.T + ba
    return value + adv - jnp.mean(adv, axis=1, keepdims=True)


if __name__ == "__main__":
    state_dim = 4
    hidden = 16
    action_dim = 2

    key = jax.random.PRNGKey(0)
    kx, k1, kb1, kv, kbv, ka, kba, kxl, kxh = jax.random.split(key, 9)

    # PyTorch nn.Linear layouts: weights (out, in), biases (out,).
    w1 = 0.1 * jax.random.normal(k1, (hidden, state_dim), dtype=jnp.float32)
    b1 = 0.1 * jax.random.normal(kb1, (hidden,), dtype=jnp.float32)
    wv = 0.1 * jax.random.normal(kv, (1, hidden), dtype=jnp.float32)
    bv = 0.1 * jax.random.normal(kbv, (1,), dtype=jnp.float32)
    wa = 0.1 * jax.random.normal(ka, (action_dim, hidden), dtype=jnp.float32)
    ba = 0.1 * jax.random.normal(kba, (action_dim,), dtype=jnp.float32)

    params = prepare_params(w1, b1, wv, bv, wa, ba)

    # --- small module-sized check (batch=2), single grid step ---
    batch = 2
    x = jax.random.normal(kx, (batch, state_dim), dtype=jnp.float32)
    out = jax.block_until_ready(dueling_dqn_forward(x, params))
    ref = dueling_dqn_reference(x, w1, b1, wv, bv, wa, ba)
    assert out.shape == (batch, action_dim)
    assert jnp.allclose(out, ref, atol=1e-4, rtol=1e-4), (out, ref)

    # --- replay-batch-sized check: whole batch in ONE grid step, f32 end to end ---
    big_batch = 256
    xl = jax.random.normal(kxl, (big_batch, state_dim), dtype=jnp.float32)
    out_l = jax.block_until_ready(dueling_dqn_forward(xl, params))
    ref_l = dueling_dqn_reference(xl, w1, b1, wv, bv, wa, ba)
    assert out_l.shape == (big_batch, action_dim)
    assert jnp.allclose(out_l, ref_l, atol=1e-4, rtol=1e-4), (out_l, ref_l)

    # --- very large batch: exercises the tiled (grid>1, "parallel") path ---
    huge_batch = 8192
    xh = jax.random.normal(kxh, (huge_batch, state_dim), dtype=jnp.float32)
    out_h = jax.block_until_ready(dueling_dqn_forward(xh, params))
    ref_h = dueling_dqn_reference(xh, w1, b1, wv, bv, wa, ba)
    assert out_h.shape == (huge_batch, action_dim)
    assert jnp.allclose(out_h, ref_h, atol=1e-4, rtol=1e-4), (out_h, ref_h)

    print("KERNEL_OK")
</pallas_src>

<mosaic_0001>
module attributes {stable_mosaic.version = 11 : i64} {
  func.func @dueling_dqn_kernel(%arg0: i32, %arg1: memref<4x2xf32, #tpu.memory_space<vmem>>, %arg2: memref<16x4xf32, #tpu.memory_space<vmem>>, %arg3: memref<16x1xf32, #tpu.memory_space<vmem>>, %arg4: memref<2x16xf32, #tpu.memory_space<vmem>>, %arg5: memref<2x1xf32, #tpu.memory_space<vmem>>, %arg6: memref<2x2xf32, #tpu.memory_space<vmem>>) attributes {dimension_semantics = [#tpu.dimension_semantics<arbitrary>], iteration_bounds = array<i64: 1>, scalar_prefetch = 0 : i64, scratch_operands = 0 : i64, tpu.core_type = #tpu.core_type<tc>, window_params = [{transform_indices = @transform_0, window_bounds = array<i64: 4, 2>}, {pipeline_mode = #tpu.pipeline_mode<synchronous>, transform_indices = @transform_1, window_bounds = array<i64: 16, 4>}, {pipeline_mode = #tpu.pipeline_mode<synchronous>, transform_indices = @transform_2, window_bounds = array<i64: 16, 1>}, {pipeline_mode = #tpu.pipeline_mode<synchronous>, transform_indices = @transform_3, window_bounds = array<i64: 2, 16>}, {pipeline_mode = #tpu.pipeline_mode<synchronous>, transform_indices = @transform_4, window_bounds = array<i64: 2, 1>}, {transform_indices = @transform_5, window_bounds = array<i64: 2, 2>}]} {
    %c0 = arith.constant 0 : index
    %c0_0 = arith.constant 0 : index
    %0 = vector.load %arg2[%c0, %c0_0] : memref<16x4xf32, #tpu.memory_space<vmem>>, vector<16x4xf32>
    %c0_1 = arith.constant 0 : index
    %c0_2 = arith.constant 0 : index
    %1 = vector.load %arg1[%c0_1, %c0_2] : memref<4x2xf32, #tpu.memory_space<vmem>>, vector<4x2xf32>
    %cst = arith.constant dense<0.000000e+00> : vector<16x2xf32>
    %2 = tpu.matmul %0, %1, %cst {dimension_numbers = #tpu.dot_dimension_numbers<[1], [0], [0], [1], [0, 0, 1, 1], [], []>} : vector<16x4xf32>, vector<4x2xf32>, vector<16x2xf32> -> vector<16x2xf32>
    %c0_3 = arith.constant 0 : index
    %c0_4 = arith.constant 0 : index
    %3 = vector.load %arg3[%c0_3, %c0_4] : memref<16x1xf32, #tpu.memory_space<vmem>>, vector<16x1xf32>
    %4 = vector.broadcast %3 : vector<16x1xf32> to vector<16x2xf32>
    %5 = arith.addf %2, %4 : vector<16x2xf32>
    %cst_5 = arith.constant 0.000000e+00 : f32
    %6 = vector.broadcast %cst_5 : f32 to vector<16x2xf32>
    %7 = arith.maximumf %5, %6 : vector<16x2xf32>
    %c0_6 = arith.constant 0 : index
    %c0_7 = arith.constant 0 : index
    %8 = vector.load %arg4[%c0_6, %c0_7] : memref<2x16xf32, #tpu.memory_space<vmem>>, vector<2x16xf32>
    %cst_8 = arith.constant dense<0.000000e+00> : vector<2x2xf32>
    %9 = tpu.matmul %8, %7, %cst_8 {dimension_numbers = #tpu.dot_dimension_numbers<[1], [0], [0], [1], [0, 0, 1, 1], [], []>} : vector<2x16xf32>, vector<16x2xf32>, vector<2x2xf32> -> vector<2x2xf32>
    %c0_9 = arith.constant 0 : index
    %c0_10 = arith.constant 0 : index
    %10 = vector.load %arg5[%c0_9, %c0_10] : memref<2x1xf32, #tpu.memory_space<vmem>>, vector<2x1xf32>
    %11 = vector.broadcast %10 : vector<2x1xf32> to vector<2x2xf32>
    %12 = arith.addf %9, %11 : vector<2x2xf32>
    %c0_11 = arith.constant 0 : index
    %c0_12 = arith.constant 0 : index
    %13 = vector.load %arg6[%c0_11, %c0_12] : memref<2x2xf32, #tpu.memory_space<vmem>>, vector<2x2xf32>
    tpu.vector_store %arg6[%c0_11, %c0_12], %12 {strides = array<i32>} : memref<2x2xf32, #tpu.memory_space<vmem>>, vector<2x2xf32>,
    return
  }
  func.func @transform_0(%arg0: i32) -> (i32, i32) {
    %c0_i32 = arith.constant 0 : i32
    %c0_i32_0 = arith.constant 0 : i32
    return %c0_i32, %arg0 : i32, i32
  }
  func.func @transform_1(%arg0: i32) -> (i32, i32) {
    %c0_i32 = arith.constant 0 : i32
    %c0_i32_0 = arith.constant 0 : i32
    %c0_i32_1 = arith.constant 0 : i32
    return %c0_i32, %c0_i32_0 : i32, i32
  }
  func.func @transform_2(%arg0: i32) -> (i32, i32) {
    %c0_i32 = arith.constant 0 : i32
    %c0_i32_0 = arith.constant 0 : i32
    %c0_i32_1 = arith.constant 0 : i32
    return %c0_i32, %c0_i32_0 : i32, i32
  }
  func.func @transform_3(%arg0: i32) -> (i32, i32) {
    %c0_i32 = arith.constant 0 : i32
    %c0_i32_0 = arith.constant 0 : i32
    %c0_i32_1 = arith.constant 0 : i32
    return %c0_i32, %c0_i32_0 : i32, i32
  }
  func.func @transform_4(%arg0: i32) -> (i32, i32) {
    %c0_i32 = arith.constant 0 : i32
    %c0_i32_0 = arith.constant 0 : i32
    %c0_i32_1 = arith.constant 0 : i32
    return %c0_i32, %c0_i32_0 : i32, i32
  }
  func.func @transform_5(%arg0: i32) -> (i32, i32) {
    %c0_i32 = arith.constant 0 : i32
    %c0_i32_0 = arith.constant 0 : i32
    return %c0_i32, %arg0 : i32, i32
  }
}

</mosaic_0001>

<llo_original>
// kernel: tpu_custom_call.1
$region0: #{tpu_custom_call.1}
  #allocation0 [shape = 'u32[]', space=smem, size = 0x4, offset = 0x4, fixed_abs, tag = 'smem constant byte address 0x4 - core index']
  #allocation1 [shape = 'u32[144,128]{1,0:T(1,128)}', space=vmem, size = 0x12000, scoped, tag = 'internal scratch']
  %s0 = inlined_call_operand.vmem [shape: f32[4,2], index: 0, kind: input, shape index: {}]
  %s1 = inlined_call_operand.vmem [shape: f32[16,4], index: 1, kind: input, shape index: {}]
  %s2 = inlined_call_operand.vmem [shape: f32[16,1], index: 2, kind: input, shape index: {}]
  %s3 = inlined_call_operand.vmem [shape: f32[2,16], index: 3, kind: input, shape index: {}]
  %s4 = inlined_call_operand.vmem [shape: f32[2,1], index: 4, kind: input, shape index: {}]
  %s5 = inlined_call_operand.hbm [shape: f32[2,2], index: 5, kind: output, shape index: {}]
  %s6 = sld [smem:[#allocation0]]
  $region30: #{tpu_custom_call.1} parent=0
    _
  %s8 = ssub.s32 1, %s6
  %s9 = scalar_select 0, %s8, %s6
  $region1: #{tpu_custom_call.1} parent=0
    #allocation2 [shape = 'u8[1024]{0}', space=vmem, size = 0x400, scoped, tag = 'output window, operand 0, single buffered']
    #allocation3 [shape = 's32[1]{0}', space=sflag, size = 0x4, scoped, tag = 'scoped memory for tpu_custom_call.1']
    %10 = vsyncpa [#allocation3], 0
    // Predicated region
    $region2: #{tpu_custom_call.1} parent=1 // pred_check
      _
    $region3: #{tpu_custom_call.1} parent=1 // pred_check_branch
      %12 = sbr.rel (0) target = $region5
    $region4: #{tpu_custom_call.1} parent=1 // pred_region
      _
    $region5: #{tpu_custom_call.1} parent=1 // pred_fallthru
      _
    // Predicated region
    $region6: #{tpu_custom_call.1} parent=1 // pred_check
      _
    $region7: #{tpu_custom_call.1} parent=1 // pred_check_branch
      %14 = sbr.rel (0) target = $region9
    $region8: #{tpu_custom_call.1} parent=1 // pred_region
      _
    $region9: #{tpu_custom_call.1} parent=1 // pred_fallthru
      _
    // Predicated region
    $region10: #{tpu_custom_call.1} parent=1 // pred_check
      _
    $region11: #{tpu_custom_call.1} parent=1 // pred_check_branch
      %16 = sbr.rel (0) target = $region13
    $region12: #{tpu_custom_call.1} parent=1 // pred_region
      _
    $region13: #{tpu_custom_call.1} parent=1 // pred_fallthru
      _
    // Predicated region
    $region14: #{tpu_custom_call.1} parent=1 // pred_check
      _
    $region15: #{tpu_custom_call.1} parent=1 // pred_check_branch
      %18 = sbr.rel (0) target = $region17
    $region16: #{tpu_custom_call.1} parent=1 // pred_region
      _
    $region17: #{tpu_custom_call.1} parent=1 // pred_fallthru
      _
    // Predicated region
    $region18: #{tpu_custom_call.1} parent=1 // pred_check
      _
    $region19: #{tpu_custom_call.1} parent=1 // pred_check_branch
      %20 = sbr.rel (0) target = $region21
    $region20: #{tpu_custom_call.1} parent=1 // pred_region
      _
    $region21: #{tpu_custom_call.1} parent=1 // pred_fallthru
      _
    %v21 = vld [vmem:[%s1] sm:$0xff]
    %v22 = vld [vmem:[%s1 + $0x8] sm:$0xff]
    %v23 = vld [vmem:[%s0] sm:$0xf]
    %v24 = vld [vmem:[%s2] sm:$0xff]
    %v25 = vld [vmem:[%s2 + $0x8] sm:$0xff]
    %27 = vset.pattern.permute.xlu0 0
    %28 = vperm.xlu0 %27, %v24
    %v29 = vpop.permute.xlu0 %28
    %32 = vset.pattern.permute.xlu0 0
    %33 = vperm.xlu0 %32, %v25
    %v34 = vpop.permute.xlu0 %33
    %vm36 = vcmask 31744
    %v38 = vsel %vm36, %v21, 0
    %v41 = vsel %vm36, %v22, 0
    %vm43 = vcmask 1043456
    %v45 = vsel %vm43, %v23, 0
    %47 = vmatprep.subr.mxu0 0.0
    %48 = vmatpush1.msra.mxu0 0.0
    %49 = vmatprep.subr.mxu0 0.0
    %50 = vmatpush1.msra.mxu0 0.0
    %51 = vmatprep.subr.mxu0 0.0
    %52 = vmatpush1.msra.mxu0 0.0
    %53 = vmatprep.subr.mxu0 0.0
    %54 = vmatpush1.msra.mxu0 0.0
    %55 = vmatprep.subr.mxu0 0.0
    %56 = vmatpush1.msra.mxu0 0.0
    %57 = vmatprep.subr.mxu0 0.0
    %58 = vmatpush1.msra.mxu0 0.0
    %59 = vmatprep.subr.mxu0 0.0
    %60 = vmatpush1.msra.mxu0 0.0
    %61 = vmatprep.subr.mxu0 0.0
    %62 = vmatpush1.msra.mxu0 0.0
    %63 = vmatprep.subr.mxu0 0.0
    %64 = vmatpush1.msra.mxu0 0.0
    %65 = vmatprep.subr.mxu0 0.0
    %66 = vmatpush1.msra.mxu0 0.0
    %67 = vmatprep.subr.mxu0 0.0
    %68 = vmatpush1.msra.mxu0 0.0
    %69 = vmatprep.subr.mxu0 0.0
    %70 = vmatpush1.msra.mxu0 0.0
    %71 = vmatprep.subr.mxu0 0.0
    %72 = vmatpush1.msra.mxu0 0.0
    %73 = vmatprep.subr.mxu0 0.0
    %74 = vmatpush1.msra.mxu0 0.0
    %75 = vmatprep.subr.mxu0 0.0
    %76 = vmatpush1.msra.mxu0 0.0
    %77 = vmatprep.subr.mxu0 0.0
    %78 = vmatpush1.msra.mxu0 %v45
    %79 = vmatprep.subr.mxu0 0.0
    %80 = vmatpush2.msra.mxu0 0.0
    %81 = vmatprep.subr.mxu0 0.0
    %82 = vmatpush2.msra.mxu0 0.0
    %83 = vmatprep.subr.mxu0 0.0
    %84 = vmatpush2.msra.mxu0 0.0
    %85 = vmatprep.subr.mxu0 0.0
    %86 = vmatpush2.msra.mxu0 0.0
    %87 = vmatprep.subr.mxu0 0.0
    %88 = vmatpush2.msra.mxu0 0.0
    %89 = vmatprep.subr.mxu0 0.0
    %90 = vmatpush2.msra.mxu0 0.0
    %91 = vmatprep.subr.mxu0 0.0
    %92 = vmatpush2.msra.mxu0 0.0
    %93 = vmatprep.subr.mxu0 0.0
    %94 = vmatpush2.msra.mxu0 0.0
    %95 = vmatprep.subr.mxu0 0.0
    %96 = vmatpush2.msra.mxu0 0.0
    %97 = vmatprep.subr.mxu0 0.0
    %98 = vmatpush2.msra.mxu0 0.0
    %99 = vmatprep.subr.mxu0 0.0
    %100 = vmatpush2.msra.mxu0 0.0
    %101 = vmatprep.subr.mxu0 0.0
    %102 = vmatpush2.msra.mxu0 0.0
    %103 = vmatprep.subr.mxu0 0.0
    %104 = vmatpush2.msra.mxu0 0.0
    %105 = vmatprep.subr.mxu0 0.0
    %106 = vmatpush2.msra.mxu0 0.0
    %107 = vmatprep.subr.mxu0 0.0
    %108 = vmatpush2.msra.mxu0 0.0
    %109 = vmatprep.subr.mxu0 0.0
    %110 = vmatpush2.msra.mxu0 0.0
    %111 = vmatprep.mubr.f32.mxu0 0.0
    %112 = vmatmul.mubr.f32.gmra.mxu0 %v38
    %v113 = vpop.f32.mrf.mxu0
    %v114 = vadd.f32 %v29, %v113
    %v115 = vpop.f32.mrf.mxu0
    %116 = vmatprep.mubr.f32.mxu0 0.0
    %117 = vmatmul.mubr.f32.gmra.mxu0 %v41
    %v118 = vpop.f32.mrf.mxu0
    %v119 = vadd.f32 %v34, %v118
    %v120 = vpop.f32.mrf.mxu0
    %121 = vdwg.mxu0
    %v122 = vmax.f32 %v114, 0.0
    %v123 = vmax.f32 %v119, 0.0
    %v124 = vld [vmem:[%s3] sm:$0x3]
    %v125 = vld [vmem:[%s4] sm:$0x3]
    %127 = vset.pattern.permute.xlu0 0
    %128 = vperm.xlu0 %127, %v125
    %v129 = vpop.permute.xlu0 %128
    %vm131 = vcmask 130048
    %v133 = vsel %vm131, %v124, 0
    %135 = vmatprep.subr.mxu0 0.0
    %136 = vmatpush1.msra.mxu0 0.0
    %137 = vmatprep.subr.mxu0 0.0
    %138 = vmatpush1.msra.mxu0 0.0
    %139 = vmatprep.subr.mxu0 0.0
    %140 = vmatpush1.msra.mxu0 0.0
    %141 = vmatprep.subr.mxu0 0.0
    %142 = vmatpush1.msra.mxu0 0.0
    %143 = vmatprep.subr.mxu0 0.0
    %144 = vmatpush1.msra.mxu0 0.0
    %145 = vmatprep.subr.mxu0 0.0
    %146 = vmatpush1.msra.mxu0 0.0
    %147 = vmatprep.subr.mxu0 0.0
    %148 = vmatpush1.msra.mxu0 0.0
    %149 = vmatprep.subr.mxu0 0.0
    %150 = vmatpush1.msra.mxu0 0.0
    %151 = vmatprep.subr.mxu0 0.0
    %152 = vmatpush1.msra.mxu0 0.0
    %153 = vmatprep.subr.mxu0 0.0
    %154 = vmatpush1.msra.mxu0 0.0
    %155 = vmatprep.subr.mxu0 0.0
    %156 = vmatpush1.msra.mxu0 0.0
    %157 = vmatprep.subr.mxu0 0.0
    %158 = vmatpush1.msra.mxu0 0.0
    %159 = vmatprep.subr.mxu0 0.0
    %160 = vmatpush1.msra.mxu0 0.0
    %161 = vmatprep.subr.mxu0 0.0
    %162 = vmatpush1.msra.mxu0 0.0
    %163 = vmatprep.subr.mxu0 0.0
    %164 = vmatpush1.msra.mxu0 %v123
    %165 = vmatprep.subr.mxu0 0.0
    %166 = vmatpush1.msra.mxu0 %v122
    %167 = vmatprep.subr.mxu0 0.0
    %168 = vmatpush2.msra.mxu0 0.0
    %169 = vmatprep.subr.mxu0 0.0
    %170 = vmatpush2.msra.mxu0 0.0
    %171 = vmatprep.subr.mxu0 0.0
    %172 = vmatpush2.msra.mxu0 0.0
    %173 = vmatprep.subr.mxu0 0.0
    %174 = vmatpush2.msra.mxu0 0.0
    %175 = vmatprep.subr.mxu0 0.0
    %176 = vmatpush2.msra.mxu0 0.0
    %177 = vmatprep.subr.mxu0 0.0
    %178 = vmatpush2.msra.mxu0 0.0
    %179 = vmatprep.subr.mxu0 0.0
    %180 = vmatpush2.msra.mxu0 0.0
    %181 = vmatprep.subr.mxu0 0.0
    %182 = vmatpush2.msra.mxu0 0.0
    %183 = vmatprep.subr.mxu0 0.0
    %184 = vmatpush2.msra.mxu0 0.0
    %185 = vmatprep.subr.mxu0 0.0
    %186 = vmatpush2.msra.mxu0 0.0
    %187 = vmatprep.subr.mxu0 0.0
    %188 = vmatpush2.msra.mxu0 0.0
    %189 = vmatprep.subr.mxu0 0.0
    %190 = vmatpush2.msra.mxu0 0.0
    %191 = vmatprep.subr.mxu0 0.0
    %192 = vmatpush2.msra.mxu0 0.0
    %193 = vmatprep.subr.mxu0 0.0
    %194 = vmatpush2.msra.mxu0 0.0
    %195 = vmatprep.subr.mxu0 0.0
    %196 = vmatpush2.msra.mxu0 0.0
    %197 = vmatprep.subr.mxu0 0.0
    %198 = vmatpush2.msra.mxu0 0.0
    %199 = vmatprep.mubr.f32.mxu0 0.0
    %200 = vmatmul.mubr.f32.gmra.mxu0 %v133
    %v201 = vpop.f32.mrf.mxu0
    %v202 = vadd.f32 %v129, %v201
    %v203 = vpop.f32.mrf.mxu0
    %204 = vdwg.mxu0
    %vm205 = vcmask 9216
    %206 = vst.msk [vmem:[#allocation2] sm:$0x3] %vm205, %v202
    // Predicated region
    $region22: #{tpu_custom_call.1} parent=1 // pred_check
      _
    $region23: #{tpu_custom_call.1} parent=1 // pred_check_branch
      %208 = sbr.rel (0) target = $region25
    $region24: #{tpu_custom_call.1} parent=1 // pred_region
      %s210 = ssub.s32 32, 32
      %211 = vsyncadd [#allocation3], %s210
      %s213 = sshll.u32 [#allocation2], 4
      %s214 = int_to_ptr.vmem [resolvable:$true] %s213
      %216 = dma.vmem_to_hbm [thread:$0]  %s214, 32, %s5, [#allocation3]
    $region25: #{tpu_custom_call.1} parent=1 // pred_fallthru
      _
    // Predicated region
    $region26: #{tpu_custom_call.1} parent=1 // pred_check
      _
    $region27: #{tpu_custom_call.1} parent=1 // pred_check_branch
      %218 = sbr.rel (0) target = $region29
    $region28: #{tpu_custom_call.1} parent=1 // pred_region
      %219 = dma.done [#allocation3], 32
    $region29: #{tpu_custom_call.1} parent=1 // pred_fallthru
      _
    %220 = vsyncpa [#allocation3], 1

</llo_original>
